<compile_context>
chip_gen: v7x
topology: tpu7x:2x2x1
jax: 0.10.0
libtpu: 0.0.40
codegen_flags: <defaults>
</compile_context>

<pallas_src>
import jax
import jax.numpy as jnp
from jax.experimental import pallas as pl
from jax.experimental.pallas import tpu as pltpu


def _round_up(x, m):
    return ((x + m - 1) // m) * m


# ----------------------------------------------------------------------------
# Kernel 1: point-wise MLP (generator hot path), transposed / lane-dense:
#   x_t  : (cin_pad, tm) bf16   (points on the 128-lane axis)
#   w1_t : (hidden, cin_pad) bf16 ; b1 : (hidden, 1) f32
#   w2_t : (c_out, hidden) bf16   ; b2 : (c_out, 1) f32
#   out  : (c_out, tm) bf16 = relu(W1^T x_t + b1) -> W2^T (.) + b2
# ----------------------------------------------------------------------------
def _point_mlp_kernel(x_ref, w1_ref, b1_ref, w2_ref, b2_ref, o_ref):
    h = jnp.dot(w1_ref[...], x_ref[...],
                preferred_element_type=jnp.float32) + b1_ref[...]
    h = jnp.maximum(h, 0.0).astype(jnp.bfloat16)
    o = jnp.dot(w2_ref[...], h,
                preferred_element_type=jnp.float32) + b2_ref[...]
    o_ref[...] = o.astype(o_ref.dtype)


def point_mlp_t(x, w1, b1, w2, b2, tm=8192):
    """x: (N, cin) f32 -> (c_out, N) bf16 point features (lane-dense)."""
    n, cin = x.shape
    hidden = w1.shape[1]
    c_out = w2.shape[1]
    cin_pad = _round_up(cin, 16)                  # whole bf16 sublane tile
    tm = min(tm, _round_up(n, 128))               # big tiles; shrink for tiny N
    n_pad = _round_up(n, tm)

    # bf16 operands; zero-pad the K dim and the point dim (transpose is a
    # single cheap pass over the small raw point features, fused with the cast)
    x_t = jnp.zeros((cin_pad, n_pad), jnp.bfloat16)
    x_t = x_t.at[:cin, :n].set(x.T.astype(jnp.bfloat16))
    w1_t = jnp.zeros((hidden, cin_pad), jnp.bfloat16)
    w1_t = w1_t.at[:, :cin].set(w1.T.astype(jnp.bfloat16))
    w2_t = w2.T.astype(jnp.bfloat16)
    b1_col = b1.reshape(hidden, 1).astype(jnp.float32)
    b2_col = b2.reshape(c_out, 1).astype(jnp.float32)

    out = pl.pallas_call(
        _point_mlp_kernel,
        out_shape=jax.ShapeDtypeStruct((c_out, n_pad), jnp.bfloat16),
        grid=(n_pad // tm,),
        in_specs=[
            pl.BlockSpec((cin_pad, tm), lambda i: (0, i)),
            pl.BlockSpec((hidden, cin_pad), lambda i: (0, 0)),
            pl.BlockSpec((hidden, 1), lambda i: (0, 0)),
            pl.BlockSpec((c_out, hidden), lambda i: (0, 0)),
            pl.BlockSpec((c_out, 1), lambda i: (0, 0)),
        ],
        out_specs=pl.BlockSpec((c_out, tm), lambda i: (0, i)),
        compiler_params=pltpu.CompilerParams(
            dimension_semantics=("parallel",)),
    )(x_t, w1_t, b1_col, w2_t, b2_col)
    return out[:, :n]                             # (c_out, N) bf16


# ----------------------------------------------------------------------------
# Kernel 2: per-voxel classifier + fused sigmoid (segmentation hot path).
#   x_t : (C, tm) bf16 ; w_t : (nc, C) bf16 ; b : (nc, 1) f32
#   out : (nc, tm) bf16 = sigmoid(w_t @ x_t + b), lane-dense stores.
# ----------------------------------------------------------------------------
def _seg_head_kernel(x_ref, w_ref, b_ref, o_ref):
    logits = jnp.dot(w_ref[...], x_ref[...],
                     preferred_element_type=jnp.float32) + b_ref[...]
    # sigmoid via exp + approx reciprocal: both ride the EUP slot (helps v5e).
    p = pl.reciprocal(1.0 + jnp.exp(-logits), approx=True)
    o_ref[...] = jnp.clip(p, 0.0, 1.0).astype(o_ref.dtype)


def seg_head_sigmoid_t(x_t, w_t, b_col, tm=32768):
    k, m = x_t.shape
    nc = w_t.shape[0]
    tm = min(tm, _round_up(m, 128))
    m_pad = _round_up(m, tm)
    if m_pad != m:
        x_t = jnp.pad(x_t, ((0, 0), (0, m_pad - m)))
    out = pl.pallas_call(
        _seg_head_kernel,
        out_shape=jax.ShapeDtypeStruct((nc, m_pad), jnp.bfloat16),
        grid=(m_pad // tm,),
        in_specs=[
            pl.BlockSpec((k, tm), lambda i: (0, i)),
            pl.BlockSpec((nc, k), lambda i: (0, 0)),
            pl.BlockSpec((nc, 1), lambda i: (0, 0)),
        ],
        out_specs=pl.BlockSpec((nc, tm), lambda i: (0, i)),
        compiler_params=pltpu.CompilerParams(
            dimension_semantics=("parallel",)),
    )(x_t, w_t, b_col)
    return out  # (nc, m_pad) bf16; caller handles the padded tail


# ----------------------------------------------------------------------------
# Full forward (mirrors cylinder_asym.forward, use_tta=False path)
# ----------------------------------------------------------------------------
def cylinder_asym_forward(params, train_pt_fea_ten, train_vox_ten, batch_size,
                          sparse_shape, train_pt_label_ten=None,
                          num_class=0, embedding_dim=5):
    H, W, L = sparse_shape
    hwl = H * W * L
    grid_size = batch_size * hwl

    # --- optional label embedding + concat (glue: small gather) -------------
    if (train_pt_label_ten is not None
            and len(train_pt_fea_ten) == len(train_pt_label_ten)):
        emb_table = params["label_emb"]  # (num_class, embedding_dim)
        new_feas = []
        for fea, lab in zip(train_pt_fea_ten, train_pt_label_ten):
            embedded = emb_table[jnp.squeeze(lab, axis=-1)]
            new_feas.append(jnp.concatenate([fea, embedded], axis=1))
        train_pt_fea_ten = new_feas

    pt_fea = jnp.concatenate(train_pt_fea_ten, axis=0)           # (Ntot, Cin)
    coords = jnp.concatenate(train_vox_ten, axis=0)              # (Ntot, 3)
    batch_idx = jnp.concatenate(
        [jnp.full((f.shape[0],), b, dtype=jnp.int32)
         for b, f in enumerate(train_pt_fea_ten)], axis=0)       # (Ntot,)
    n_tot = pt_fea.shape[0]

    # --- cylinder_3d_generator: point-wise MLP (Pallas, (C, N) bf16) --------
    feat_t = point_mlp_t(pt_fea,
                         params["w1"], params["b1"],
                         params["w2"], params["b2"])             # (C, Ntot) bf16

    # --- scatter-max pooling onto OCCUPIED voxels only (glue) ----------------
    flat_idx = (batch_idx * hwl
                + coords[:, 0] * (W * L)
                + coords[:, 1] * L
                + coords[:, 2]).astype(jnp.int32)
    uniq_idx, inv = jnp.unique(flat_idx, return_inverse=True,
                               size=n_tot, fill_value=grid_size)
    inv = inv.reshape(-1)
    # pool per channel -> output already in (C, M) layout for the seg head
    pooled_t = jax.vmap(
        lambda row: jax.ops.segment_max(row, inv, num_segments=n_tot))(feat_t)
    valid = uniq_idx < grid_size                                  # real voxels
    pooled_t = jnp.where(valid[None, :], pooled_t, 0).astype(jnp.bfloat16)

    # --- cylinder_3d_spconv_seg + sigmoid on occupied voxels (Pallas) --------
    # TODO(synk): submanifold/asymmetric sparse 3D convs have no clean Pallas
    # equivalent; replaced by a per-voxel 1x1x1 linear classifier.
    w_t = params["w_seg"].T.astype(jnp.bfloat16)                  # (nc, C)
    b_col = params["b_seg"].reshape(-1, 1).astype(jnp.float32)    # (nc, 1)
    probs_occ_t = seg_head_sigmoid_t(pooled_t, w_t, b_col)        # (nc, m_pad) bf16
    nc = w_t.shape[0]
    m_pad = probs_occ_t.shape[1]

    # --- densify probabilities directly in NCDHW order (single scatter) -----
    # Empty voxels behave like a zero feature vector -> sigmoid(bias).
    empty_prob = jax.nn.sigmoid(params["b_seg"].reshape(-1)).astype(jnp.float32)
    dense = jnp.broadcast_to(empty_prob[None, :, None],
                             (batch_size, nc, hwl)).reshape(-1)   # (B*nc*HWL,)
    uniq_pad = jnp.pad(uniq_idx, (0, m_pad - n_tot),
                       constant_values=grid_size)                 # pad -> OOB drop
    b_of = uniq_pad // hwl                                        # == B for fill
    loc = uniq_pad % hwl
    c_idx = jnp.arange(nc, dtype=jnp.int32)
    idx_full = (b_of[None, :] * (nc * hwl)
                + c_idx[:, None] * hwl
                + loc[None, :])                                   # (nc, m_pad)
    dense = dense.at[idx_full].set(probs_occ_t.astype(jnp.float32), mode="drop")

    # already channels-first: PyTorch NCDHW (B, num_class, H, W, L), no transpose
    return dense.reshape(batch_size, nc, H, W, L)


# ----------------------------------------------------------------------------
# Pure-JAX f32 reference (same synthetic generator / head semantics)
# ----------------------------------------------------------------------------
def _reference_forward(params, pt_fea_list, vox_list, label_list, batch_size,
                       sparse_shape, num_class):
    H, W, L = sparse_shape
    feas = []
    for fea, lab in zip(pt_fea_list, label_list):
        emb = params["label_emb"][jnp.squeeze(lab, -1)]
        feas.append(jnp.concatenate([fea, emb], axis=1))
    pt_fea = jnp.concatenate(feas, 0)
    coords = jnp.concatenate(vox_list, 0)
    batch_idx = jnp.concatenate([jnp.full((f.shape[0],), b, jnp.int32)
                                 for b, f in enumerate(feas)], 0)
    h = jnp.maximum(pt_fea @ params["w1"] + params["b1"], 0.0)
    feat = h @ params["w2"] + params["b2"]
    flat = (batch_idx * (H * W * L) + coords[:, 0] * (W * L)
            + coords[:, 1] * L + coords[:, 2])
    gs = batch_size * H * W * L
    c = feat.shape[1]
    dense = jnp.full((gs, c), -jnp.inf, jnp.float32).at[flat].max(feat)
    occupied = jnp.isfinite(dense[:, :1])
    dense = jnp.where(occupied, dense, 0.0)
    probs = jax.nn.sigmoid(dense @ params["w_seg"] + params["b_seg"])
    probs = probs.reshape(batch_size, H, W, L, num_class)
    return jnp.transpose(probs, (0, 4, 1, 2, 3))


# ----------------------------------------------------------------------------
# Deterministic parameter construction
# ----------------------------------------------------------------------------
def make_params(key, fea_dim, embedding_dim, hidden, out_c, num_class):
    ks = jax.random.split(key, 6)
    cin = fea_dim + embedding_dim
    return {
        "label_emb": 0.1 * jax.random.normal(ks[0], (num_class, embedding_dim), jnp.float32),
        "w1": 0.1 * jax.random.normal(ks[1], (cin, hidden), jnp.float32),
        "b1": jnp.zeros((1, hidden), jnp.float32),
        "w2": 0.1 * jax.random.normal(ks[2], (hidden, out_c), jnp.float32),
        "b2": jnp.zeros((1, out_c), jnp.float32),
        "w_seg": 0.1 * jax.random.normal(ks[3], (out_c, num_class), jnp.float32),
        "b_seg": jnp.zeros((1, num_class), jnp.float32),
    }


if __name__ == "__main__":
    key = jax.random.PRNGKey(0)
    batch_size = 2
    n_pts = 128
    fea_dim = 4
    embedding_dim = 5
    num_class = 8
    hidden = 32
    out_c = 16
    sparse_shape = (16, 16, 8)

    params = make_params(key, fea_dim, embedding_dim, hidden, out_c, num_class)

    kf, kc, kl = jax.random.split(jax.random.PRNGKey(1), 3)
    train_pt_fea_ten = [
        jax.random.normal(jax.random.fold_in(kf, b), (n_pts, fea_dim), jnp.float32)
        for b in range(batch_size)
    ]
    train_vox_ten = [
        jnp.stack([
            jax.random.randint(jax.random.fold_in(kc, 10 * b + 0), (n_pts,), 0, sparse_shape[0]),
            jax.random.randint(jax.random.fold_in(kc, 10 * b + 1), (n_pts,), 0, sparse_shape[1]),
            jax.random.randint(jax.random.fold_in(kc, 10 * b + 2), (n_pts,), 0, sparse_shape[2]),
        ], axis=1).astype(jnp.int32)
        for b in range(batch_size)
    ]
    train_pt_label_ten = [
        jax.random.randint(jax.random.fold_in(kl, b), (n_pts, 1), 0, num_class).astype(jnp.int32)
        for b in range(batch_size)
    ]

    out = cylinder_asym_forward(
        params, train_pt_fea_ten, train_vox_ten, batch_size, sparse_shape,
        train_pt_label_ten=train_pt_label_ten,
        num_class=num_class, embedding_dim=embedding_dim)
    out = jax.block_until_ready(out)

    assert out.shape == (batch_size, num_class, *sparse_shape), out.shape
    assert bool(jnp.all(jnp.isfinite(out)))
    assert bool(jnp.all((out >= 0.0) & (out <= 1.0)))

    ref = _reference_forward(params, train_pt_fea_ten, train_vox_ten,
                             train_pt_label_ten, batch_size, sparse_shape,
                             num_class)
    max_err = float(jnp.max(jnp.abs(out - ref)))
    assert max_err < 5e-2, f"max abs error vs f32 reference: {max_err}"

    print("KERNEL_OK")
</pallas_src>

<mosaic_0001>
module attributes {stable_mosaic.version = 11 : i64} {
  func.func @_point_mlp_kernel(%arg0: i32, %arg1: memref<16x256xbf16, #tpu.memory_space<vmem>>, %arg2: memref<32x16xbf16, #tpu.memory_space<vmem>>, %arg3: memref<32x1xf32, #tpu.memory_space<vmem>>, %arg4: memref<16x32xbf16, #tpu.memory_space<vmem>>, %arg5: memref<16x1xf32, #tpu.memory_space<vmem>>, %arg6: memref<16x256xbf16, #tpu.memory_space<vmem>>) attributes {dimension_semantics = [#tpu.dimension_semantics<parallel>], iteration_bounds = array<i64: 1>, scalar_prefetch = 0 : i64, scratch_operands = 0 : i64, tpu.core_type = #tpu.core_type<tc>, window_params = [{transform_indices = @transform_0, window_bounds = array<i64: 16, 256>}, {pipeline_mode = #tpu.pipeline_mode<synchronous>, transform_indices = @transform_1, window_bounds = array<i64: 32, 16>}, {pipeline_mode = #tpu.pipeline_mode<synchronous>, transform_indices = @transform_2, window_bounds = array<i64: 32, 1>}, {pipeline_mode = #tpu.pipeline_mode<synchronous>, transform_indices = @transform_3, window_bounds = array<i64: 16, 32>}, {pipeline_mode = #tpu.pipeline_mode<synchronous>, transform_indices = @transform_4, window_bounds = array<i64: 16, 1>}, {transform_indices = @transform_5, window_bounds = array<i64: 16, 256>}]} {
    %c0 = arith.constant 0 : index
    %c0_0 = arith.constant 0 : index
    %0 = vector.load %arg2[%c0, %c0_0] : memref<32x16xbf16, #tpu.memory_space<vmem>>, vector<32x16xbf16>
    %c0_1 = arith.constant 0 : index
    %c0_2 = arith.constant 0 : index
    %1 = vector.load %arg1[%c0_1, %c0_2] : memref<16x256xbf16, #tpu.memory_space<vmem>>, vector<16x256xbf16>
    %cst = arith.constant dense<0.000000e+00> : vector<32x256xf32>
    %2 = tpu.matmul %0, %1, %cst {dimension_numbers = #tpu.dot_dimension_numbers<[1], [0], [0], [1], [0, 0, 1, 1], [], []>} : vector<32x16xbf16>, vector<16x256xbf16>, vector<32x256xf32> -> vector<32x256xf32>
    %c0_3 = arith.constant 0 : index
    %c0_4 = arith.constant 0 : index
    %3 = vector.load %arg3[%c0_3, %c0_4] : memref<32x1xf32, #tpu.memory_space<vmem>>, vector<32x1xf32>
    %4 = vector.broadcast %3 : vector<32x1xf32> to vector<32x256xf32>
    %5 = arith.addf %2, %4 : vector<32x256xf32>
    %cst_5 = arith.constant 0.000000e+00 : f32
    %6 = vector.broadcast %cst_5 : f32 to vector<32x256xf32>
    %7 = arith.maximumf %5, %6 : vector<32x256xf32>
    %8 = arith.truncf %7 : vector<32x256xf32> to vector<32x256xbf16>
    %c0_6 = arith.constant 0 : index
    %c0_7 = arith.constant 0 : index
    %9 = vector.load %arg4[%c0_6, %c0_7] : memref<16x32xbf16, #tpu.memory_space<vmem>>, vector<16x32xbf16>
    %cst_8 = arith.constant dense<0.000000e+00> : vector<16x256xf32>
    %10 = tpu.matmul %9, %8, %cst_8 {dimension_numbers = #tpu.dot_dimension_numbers<[1], [0], [0], [1], [0, 0, 1, 1], [], []>} : vector<16x32xbf16>, vector<32x256xbf16>, vector<16x256xf32> -> vector<16x256xf32>
    %c0_9 = arith.constant 0 : index
    %c0_10 = arith.constant 0 : index
    %11 = vector.load %arg5[%c0_9, %c0_10] : memref<16x1xf32, #tpu.memory_space<vmem>>, vector<16x1xf32>
    %12 = vector.broadcast %11 : vector<16x1xf32> to vector<16x256xf32>
    %13 = arith.addf %10, %12 : vector<16x256xf32>
    %14 = arith.truncf %13 : vector<16x256xf32> to vector<16x256xbf16>
    %c0_11 = arith.constant 0 : index
    %c0_12 = arith.constant 0 : index
    %15 = vector.load %arg6[%c0_11, %c0_12] : memref<16x256xbf16, #tpu.memory_space<vmem>>, vector<16x256xbf16>
    tpu.vector_store %arg6[%c0_11, %c0_12], %14 {strides = array<i32>} : memref<16x256xbf16, #tpu.memory_space<vmem>>, vector<16x256xbf16>,
    return
  }
  func.func @transform_0(%arg0: i32) -> (i32, i32) {
    %c0_i32 = arith.constant 0 : i32
    %c0_i32_0 = arith.constant 0 : i32
    return %c0_i32, %arg0 : i32, i32
  }
  func.func @transform_1(%arg0: i32) -> (i32, i32) {
    %c0_i32 = arith.constant 0 : i32
    %c0_i32_0 = arith.constant 0 : i32
    %c0_i32_1 = arith.constant 0 : i32
    return %c0_i32, %c0_i32_0 : i32, i32
  }
  func.func @transform_2(%arg0: i32) -> (i32, i32) {
    %c0_i32 = arith.constant 0 : i32
    %c0_i32_0 = arith.constant 0 : i32
    %c0_i32_1 = arith.constant 0 : i32
    return %c0_i32, %c0_i32_0 : i32, i32
  }
  func.func @transform_3(%arg0: i32) -> (i32, i32) {
    %c0_i32 = arith.constant 0 : i32
    %c0_i32_0 = arith.constant 0 : i32
    %c0_i32_1 = arith.constant 0 : i32
    return %c0_i32, %c0_i32_0 : i32, i32
  }
  func.func @transform_4(%arg0: i32) -> (i32, i32) {
    %c0_i32 = arith.constant 0 : i32
    %c0_i32_0 = arith.constant 0 : i32
    %c0_i32_1 = arith.constant 0 : i32
    return %c0_i32, %c0_i32_0 : i32, i32
  }
  func.func @transform_5(%arg0: i32) -> (i32, i32) {
    %c0_i32 = arith.constant 0 : i32
    %c0_i32_0 = arith.constant 0 : i32
    return %c0_i32, %arg0 : i32, i32
  }
}

</mosaic_0001>

<llo_original>
// kernel: tpu_custom_call.1
$region0: #{tpu_custom_call.1}
  #allocation0 [shape = 'u32[]', space=smem, size = 0x4, offset = 0x4, fixed_abs, tag = 'smem constant byte address 0x4 - core index']
  #allocation1 [shape = 'u32[144,128]{1,0:T(1,128)}', space=vmem, size = 0x12000, scoped, tag = 'internal scratch']
  %s0 = inlined_call_operand.vmem [shape: bf16[16,256], index: 0, kind: input, shape index: {}]
  %s1 = inlined_call_operand.vmem [shape: bf16[32,16], index: 1, kind: input, shape index: {}]
  %s2 = inlined_call_operand.vmem [shape: f32[32,1], index: 2, kind: input, shape index: {}]
  %s3 = inlined_call_operand.vmem [shape: bf16[16,32], index: 3, kind: input, shape index: {}]
  %s4 = inlined_call_operand.vmem [shape: f32[16,1], index: 4, kind: input, shape index: {}]
  %s5 = inlined_call_operand.hbm [shape: bf16[16,256], index: 5, kind: output, shape index: {}]
  %s6 = sld [smem:[#allocation0]]
  $region30: #{tpu_custom_call.1} parent=0
    _
  %s8 = ssub.s32 1, %s6
  %s9 = scalar_select 0, %s8, %s6
  $region1: #{tpu_custom_call.1} parent=0
    #allocation2 [shape = 'u8[8192]{0}', space=vmem, size = 0x2000, scoped, tag = 'output window, operand 0, single buffered']
    #allocation3 [shape = 's32[1]{0}', space=sflag, size = 0x4, scoped, tag = 'scoped memory for tpu_custom_call.1']
    %10 = vsyncpa [#allocation3], 0
    // Predicated region
    $region2: #{tpu_custom_call.1} parent=1 // pred_check
      _
    $region3: #{tpu_custom_call.1} parent=1 // pred_check_branch
      %12 = sbr.rel (0) target = $region5
    $region4: #{tpu_custom_call.1} parent=1 // pred_region
      _
    $region5: #{tpu_custom_call.1} parent=1 // pred_fallthru
      _
    // Predicated region
    $region6: #{tpu_custom_call.1} parent=1 // pred_check
      _
    $region7: #{tpu_custom_call.1} parent=1 // pred_check_branch
      %14 = sbr.rel (0) target = $region9
    $region8: #{tpu_custom_call.1} parent=1 // pred_region
      _
    $region9: #{tpu_custom_call.1} parent=1 // pred_fallthru
      _
    // Predicated region
    $region10: #{tpu_custom_call.1} parent=1 // pred_check
      _
    $region11: #{tpu_custom_call.1} parent=1 // pred_check_branch
      %16 = sbr.rel (0) target = $region13
    $region12: #{tpu_custom_call.1} parent=1 // pred_region
      _
    $region13: #{tpu_custom_call.1} parent=1 // pred_fallthru
      _
    // Predicated region
    $region14: #{tpu_custom_call.1} parent=1 // pred_check
      _
    $region15: #{tpu_custom_call.1} parent=1 // pred_check_branch
      %18 = sbr.rel (0) target = $region17
    $region16: #{tpu_custom_call.1} parent=1 // pred_region
      _
    $region17: #{tpu_custom_call.1} parent=1 // pred_fallthru
      _
    // Predicated region
    $region18: #{tpu_custom_call.1} parent=1 // pred_check
      _
    $region19: #{tpu_custom_call.1} parent=1 // pred_check_branch
      %20 = sbr.rel (0) target = $region21
    $region20: #{tpu_custom_call.1} parent=1 // pred_region
      _
    $region21: #{tpu_custom_call.1} parent=1 // pred_fallthru
      _
    %v22 = vld [vmem:[%s1] sm:$0xf]
    %v23 = vld [vmem:[%s1 + $0x4] sm:$0xf]
    %v24 = vld [vmem:[%s1 + $0x8] sm:$0xf]
    %v25 = vld [vmem:[%s1 + $0xc] sm:$0xf]
    %v26 = vld [vmem:[%s0] sm:$0xff]
    %v27 = vld [vmem:[%s0 + $0x8] sm:$0xff]
    %v28 = vld [vmem:[%s2] sm:$0xff]
    %v29 = vld [vmem:[%s2 + $0x8] sm:$0xff]
    %v30 = vld [vmem:[%s2 + $0x10] sm:$0xff]
    %v31 = vld [vmem:[%s2 + $0x18] sm:$0xff]
    %33 = vset.pattern.permute.xlu0 0
    %34 = vperm.xlu0 %33, %v28
    %v35 = vpop.permute.xlu0 %34
    %38 = vset.pattern.permute.xlu0 0
    %39 = vperm.xlu0 %38, %v29
    %v40 = vpop.permute.xlu0 %39
    %43 = vset.pattern.permute.xlu0 0
    %44 = vperm.xlu0 %43, %v30
    %v45 = vpop.permute.xlu0 %44
    %48 = vset.pattern.permute.xlu0 0
    %49 = vperm.xlu0 %48, %v31
    %v50 = vpop.permute.xlu0 %49
    %v56 = vunpack.c.l.b16 %v22
    %v57 = vunpack.c.l.b16 %v23
    %v58 = vunpack.c.l.b16 %v24
    %v59 = vunpack.c.l.b16 %v25
    %v60 = vpack.c.b16 %v57, %v56
    %v61 = vpack.c.b16 %v59, %v58
    %v64 = vunpack.c.l.b16 %v26
    %v65 = vunpack.c.h.b16 %v26
    %v66 = vunpack.c.l.b16 %v27
    %v67 = vunpack.c.h.b16 %v27
    %v68 = vpack.c.b16 %v66, %v64
    %v69 = vpack.c.b16 %v67, %v65
    %vm72 = vcmask 130048
    %v74 = vsel %vm72, %v60, 0
    %v77 = vsel %vm72, %v61, 0
    %79 = vmatprep.subr.bf16.mxu0 %v69
    %80 = vmatpush1.bf16.msra.mxu0 %v68
    %81 = vmatprep.subr.bf16.mxu0 0
    %82 = vmatpush1.bf16.msra.mxu0 0
    %83 = vmatprep.subr.bf16.mxu0 0
    %84 = vmatpush1.bf16.msra.mxu0 0
    %85 = vmatprep.subr.bf16.mxu0 0
    %86 = vmatpush1.bf16.msra.mxu0 0
    %87 = vmatprep.subr.bf16.mxu0 0
    %88 = vmatpush1.bf16.msra.mxu0 0
    %89 = vmatprep.subr.bf16.mxu0 0
    %90 = vmatpush1.bf16.msra.mxu0 0
    %91 = vmatprep.subr.bf16.mxu0 0
    %92 = vmatpush1.bf16.msra.mxu0 0
    %93 = vmatprep.subr.bf16.mxu0 0
    %94 = vmatpush1.bf16.msra.mxu0 0
    %95 = vmatprep.subr.bf16.mxu0 0
    %96 = vmatpush1.bf16.msra.mxu0 0
    %97 = vmatprep.subr.bf16.mxu0 0
    %98 = vmatpush1.bf16.msra.mxu0 0
    %99 = vmatprep.subr.bf16.mxu0 0
    %100 = vmatpush1.bf16.msra.mxu0 0
    %101 = vmatprep.subr.bf16.mxu0 0
    %102 = vmatpush1.bf16.msra.mxu0 0
    %103 = vmatprep.subr.bf16.mxu0 0
    %104 = vmatpush1.bf16.msra.mxu0 0
    %105 = vmatprep.subr.bf16.mxu0 0
    %106 = vmatpush1.bf16.msra.mxu0 0
    %107 = vmatprep.subr.bf16.mxu0 0
    %108 = vmatpush1.bf16.msra.mxu0 0
    %109 = vmatprep.subr.bf16.mxu0 0
    %110 = vmatpush1.bf16.msra.mxu0 0
    %111 = vmatprep.mubr.bf16.mxu0 0
    %112 = vmatmul.mubr.bf16.gmra.mrb[0].mxu0 %v74
    %v113 = vpop.f32.mrb[0].mxu0
    %v114 = vadd.f32 %v35, %v113
    %v115 = vpop.f32.mrb[0].mxu0
    %v116 = vadd.f32 %v35, %v115
    %v117 = vpop.f32.mrb[0].mxu0
    %v118 = vadd.f32 %v40, %v117
    %v119 = vpop.f32.mrb[0].mxu0
    %v120 = vadd.f32 %v40, %v119
    %121 = vmatprep.mubr.bf16.mxu0 0
    %122 = vmatmul.mubr.bf16.gmra.mrb[0].mxu0 %v77
    %v123 = vpop.f32.mrb[0].mxu0
    %v124 = vadd.f32 %v45, %v123
    %v125 = vpop.f32.mrb[0].mxu0
    %v126 = vadd.f32 %v45, %v125
    %v127 = vpop.f32.mrb[0].mxu0
    %v128 = vadd.f32 %v50, %v127
    %v129 = vpop.f32.mrb[0].mxu0
    %v130 = vadd.f32 %v50, %v129
    %131 = vdwg.mxu0
    %v132 = vmax.f32 %v114, 0.0
    %v133 = vmax.f32 %v116, 0.0
    %v134 = vmax.f32 %v118, 0.0
    %v135 = vmax.f32 %v120, 0.0
    %v136 = vmax.f32 %v124, 0.0
    %v137 = vmax.f32 %v126, 0.0
    %v138 = vmax.f32 %v128, 0.0
    %v139 = vmax.f32 %v130, 0.0
    %v140 = vpack.c.bf16 %v134, %v132
    %v141 = vpack.c.bf16 %v135, %v133
    %v142 = vpack.c.bf16 %v138, %v136
    %v143 = vpack.c.bf16 %v139, %v137
    %v144 = vld [vmem:[%s3] sm:$0xf]
    %v145 = vld [vmem:[%s3 + $0x4] sm:$0xf]
    %v146 = vld [vmem:[%s4] sm:$0xff]
    %v147 = vld [vmem:[%s4 + $0x8] sm:$0xff]
    %149 = vset.pattern.permute.xlu0 0
    %150 = vperm.xlu0 %149, %v146
    %v151 = vpop.permute.xlu0 %150
    %154 = vset.pattern.permute.xlu0 0
    %155 = vperm.xlu0 %154, %v147
    %v156 = vpop.permute.xlu0 %155
    %v160 = vunpack.c.l.b16 %v144
    %v161 = vunpack.c.l.b16 %v145
    %v162 = vpack.c.b16 %v161, %v160
    %vm163 = vcmask 261120
    %v165 = vsel %vm163, %v162, 0
    %167 = vmatprep.subr.bf16.mxu0 %v141
    %168 = vmatpush1.bf16.msra.mxu0 %v140
    %169 = vmatprep.subr.bf16.mxu0 %v143
    %170 = vmatpush1.bf16.msra.mxu0 %v142
    %171 = vmatprep.subr.bf16.mxu0 0
    %172 = vmatpush1.bf16.msra.mxu0 0
    %173 = vmatprep.subr.bf16.mxu0 0
    %174 = vmatpush1.bf16.msra.mxu0 0
    %175 = vmatprep.subr.bf16.mxu0 0
    %176 = vmatpush1.bf16.msra.mxu0 0
    %177 = vmatprep.subr.bf16.mxu0 0
    %178 = vmatpush1.bf16.msra.mxu0 0
    %179 = vmatprep.subr.bf16.mxu0 0
    %180 = vmatpush1.bf16.msra.mxu0 0
    %181 = vmatprep.subr.bf16.mxu0 0
    %182 = vmatpush1.bf16.msra.mxu0 0
    %183 = vmatprep.subr.bf16.mxu0 0
    %184 = vmatpush1.bf16.msra.mxu0 0
    %185 = vmatprep.subr.bf16.mxu0 0
    %186 = vmatpush1.bf16.msra.mxu0 0
    %187 = vmatprep.subr.bf16.mxu0 0
    %188 = vmatpush1.bf16.msra.mxu0 0
    %189 = vmatprep.subr.bf16.mxu0 0
    %190 = vmatpush1.bf16.msra.mxu0 0
    %191 = vmatprep.subr.bf16.mxu0 0
    %192 = vmatpush1.bf16.msra.mxu0 0
    %193 = vmatprep.subr.bf16.mxu0 0
    %194 = vmatpush1.bf16.msra.mxu0 0
    %195 = vmatprep.subr.bf16.mxu0 0
    %196 = vmatpush1.bf16.msra.mxu0 0
    %197 = vmatprep.subr.bf16.mxu0 0
    %198 = vmatpush1.bf16.msra.mxu0 0
    %199 = vmatprep.mubr.bf16.mxu0 0
    %200 = vmatmul.mubr.bf16.gmra.mrb[0].mxu0 %v165
    %v201 = vpop.f32.mrb[0].mxu0
    %v202 = vadd.f32 %v151, %v201
    %v203 = vpop.f32.mrb[0].mxu0
    %v204 = vadd.f32 %v151, %v203
    %v205 = vpop.f32.mrb[0].mxu0
    %v206 = vadd.f32 %v156, %v205
    %v207 = vpop.f32.mrb[0].mxu0
    %v208 = vadd.f32 %v156, %v207
    %209 = vdwg.mxu0
    %v210 = vpack.c.bf16 %v206, %v202
    %v211 = vpack.c.bf16 %v208, %v204
    %v214 = vunpack.c.l.b16 %v210
    %v215 = vunpack.c.l.b16 %v211
    %v216 = vunpack.c.h.b16 %v210
    %v217 = vunpack.c.h.b16 %v211
    %v218 = vpack.c.b16 %v215, %v214
    %v219 = vpack.c.b16 %v217, %v216
    %222 = vst [vmem:[#allocation2] sm:$0xff] %v218
    %223 = vst [vmem:[#allocation2 + $0x8] sm:$0xff] %v219
    // Predicated region
    $region22: #{tpu_custom_call.1} parent=1 // pred_check
      _
    $region23: #{tpu_custom_call.1} parent=1 // pred_check_branch
      %225 = sbr.rel (0) target = $region25
    $region24: #{tpu_custom_call.1} parent=1 // pred_region
      %s227 = ssub.s32 256, 256
      %228 = vsyncadd [#allocation3], %s227
      %s229 = sshll.u32 [#allocation2], 4
      %s230 = int_to_ptr.vmem [resolvable:$true] %s229
      %235 = dma.vmem_to_hbm [thread:$0]  %s230, 256, %s5, [#allocation3], 128, 128, 8
    $region25: #{tpu_custom_call.1} parent=1 // pred_fallthru
      _
    // Predicated region
    $region26: #{tpu_custom_call.1} parent=1 // pred_check
      _
    $region27: #{tpu_custom_call.1} parent=1 // pred_check_branch
      %237 = sbr.rel (0) target = $region29
    $region28: #{tpu_custom_call.1} parent=1 // pred_region
      %238 = dma.done [#allocation3], 256
    $region29: #{tpu_custom_call.1} parent=1 // pred_fallthru
      _
    %239 = vsyncpa [#allocation3], 1

</llo_original>
